<compile_context>
chip_gen: v7x
topology: tpu7x:2x2x1
jax: 0.10.0
libtpu: 0.0.40
codegen_flags: <defaults>
</compile_context>

<pallas_src>
import functools

import jax
import jax.numpy as jnp
from jax import lax
from jax.experimental import pallas as pl
from jax.experimental.pallas import tpu as pltpu

_MiB = 1024 * 1024

# 2 inputs x 2 pipeline buffers must fit in this budget.  With the explicit
# vmem_limit below this is safe on every TPU generation (>= 64 MiB physical).
_DEFAULT_VMEM_INPUT_BUDGET = 20 * _MiB
_VMEM_HEADROOM_BYTES = 8 * _MiB        # output buffers + accumulator + internal scratch
_TARGET_STEP_INPUT_BYTES = 6 * _MiB    # aim to move at least this much input per grid step
_MIN_STEP_INPUT_BYTES = 2 * _MiB       # ...but allow smaller steps to reach >= 8 steps (v7x)
_FUSED_MAX_D = 4096                    # whole feature row in one block up to this D
_TK_TILED = 2048                       # feature tile for the K-tiled path


def _round_up(x: int, m: int) -> int:
    return ((x + m - 1) // m) * m


def _sublane_multiple(dtype) -> int:
    # Sub-32-bit dtypes pack along sublanes: keep row tiles aligned to packing.
    return {4: 8, 2: 16, 1: 32}.get(jnp.dtype(dtype).itemsize, 8)


def _diff_f32(x, t, native_diff: bool):
    if native_diff:
        # Subtract in native (e.g. bf16) dtype, upcast only the difference.
        return (x - t).astype(jnp.float32)
    return x.astype(jnp.float32) - t.astype(jnp.float32)


# ----------------------------- kernels --------------------------------------


def _euclidean_kernel_fused(x_ref, t_ref, o_ref, *, native_diff):
    """Single-pass kernel: whole feature row in one block.

    Ragged last row-block is fine: garbage rows produce garbage outputs that
    are masked on writeback (rows are independent, no cross-contamination).
    """
    d = _diff_f32(x_ref[...], t_ref[...], native_diff)
    o_ref[...] = jnp.sqrt(jnp.sum(d * d, axis=1, keepdims=True))


def _euclidean_kernel_ktiled(x_ref, t_ref, o_ref, acc_ref, *, d_total, tk, native_diff):
    """K-tiled kernel: accumulate sum-of-squares over the feature axis."""
    k = pl.program_id(1)

    @pl.when(k == 0)
    def _():
        acc_ref[...] = jnp.zeros_like(acc_ref)

    d = _diff_f32(x_ref[...], t_ref[...], native_diff)

    if d_total % tk != 0:
        # Ragged last K tile: zero out-of-range lanes so they can't corrupt
        # valid rows' sums (one cheap VPU select per tile; HBM-bound anyway).
        col = k * tk + lax.broadcasted_iota(jnp.int32, d.shape, 1)
        d = jnp.where(col < d_total, d, 0.0)

    acc_ref[...] += jnp.sum(d * d, axis=1, keepdims=True)

    @pl.when(k == pl.num_programs(1) - 1)
    def _():
        o_ref[...] = jnp.sqrt(acc_ref[...])


# --------------------------- tiling heuristics -------------------------------


def _choose_batch_tile(B: int, tk: int, itemsize: int, sub: int, budget: int) -> int:
    """Pick the batch tile from a VMEM budget + per-step byte target."""
    # VMEM cap: 2 inputs x 2 pipeline buffers of (tb, tk) each.
    tb_cap = max(sub, (budget // (4 * tk * itemsize)) // sub * sub)

    total_in_bytes = 2 * B * tk * itemsize  # input bytes per pass over the batch
    steps_vmem = pl.cdiv(B, tb_cap)                                   # forced by VMEM
    steps_target = max(1, total_in_bytes // _TARGET_STEP_INPUT_BYTES)  # ~6 MiB / step
    steps = max(steps_vmem, steps_target)

    # v7x: prefer an even grid of >= 8 steps (>= 4 pipelined steps per
    # TensorCore) when each step still moves a useful amount of data.
    steps_hi = min(max(1, B // sub), max(1, total_in_bytes // _MIN_STEP_INPUT_BYTES))
    if steps < 8:
        steps = max(steps, min(8, steps_hi))
    # Always give both TensorCores at least one block when B allows.
    if steps < 2 and B >= 2 * sub:
        steps = 2
    if steps > 1 and steps % 2:
        steps += 1  # even step count -> balanced across the two v7x TCs

    tb = max(sub, _round_up(pl.cdiv(B, steps), sub))
    return min(tb, tb_cap)


# ------------------------------ wrapper --------------------------------------


def euclidean_loss(
    inputs: jax.Array,
    targets: jax.Array,
    *,
    tb: int | None = None,
    tk: int | None = None,
    native_diff: bool | None = None,
    vmem_input_budget_bytes: int = _DEFAULT_VMEM_INPUT_BUDGET,
) -> jax.Array:
    """Pallas implementation of EuclideanLoss.forward for 2-D (B, D) inputs."""
    assert inputs.shape == targets.shape, "inputs/targets must have equal shapes"
    assert inputs.ndim == 2, "kernel expects (B, D) inputs"
    # TODO(synk): torch's dim=1 reduction for ndim>2 inputs (keeping trailing
    # dims) is not implemented; training code uses (B, D).
    B, D = inputs.shape

    if native_diff is None:
        # Native 16-bit subtract rounds the difference before squaring: a tiny
        # numerics change, fine for a loss.  Force False for exact upcast-first
        # math (recommended on v5e, which has no bf16 VPU).
        native_diff = (
            inputs.dtype == targets.dtype
            and inputs.dtype in (jnp.bfloat16, jnp.float16)
        )

    itemsize = max(jnp.dtype(inputs.dtype).itemsize, jnp.dtype(targets.dtype).itemsize)
    sub = max(_sublane_multiple(inputs.dtype), _sublane_multiple(targets.dtype))

    # ---- feature (K) tiling decision -------------------------------------
    if tk is None:
        tk = D if D <= _FUSED_MAX_D else _TK_TILED
    tk = min(tk, D)
    tiled_k = tk < D
    if tiled_k:
        tk = _round_up(tk, 128)  # lane-axis divisibility for non-full blocks
        if tk >= D:
            tiled_k, tk = False, D

    # ---- batch (row) tiling decision --------------------------------------
    if tb is None:
        tb = _choose_batch_tile(B, tk, itemsize, sub, vmem_input_budget_bytes)
    else:
        tb = max(sub, _round_up(tb, sub))
    grid_b = pl.cdiv(B, tb)  # ragged last block: no host-side padding

    vmem_limit_bytes = int(min(vmem_input_budget_bytes + _VMEM_HEADROOM_BYTES, 60 * _MiB))

    out_shape = jax.ShapeDtypeStruct((B, 1), jnp.float32)

    if not tiled_k:
        out2d = pl.pallas_call(
            functools.partial(_euclidean_kernel_fused, native_diff=native_diff),
            out_shape=out_shape,
            grid_spec=pltpu.PrefetchScalarGridSpec(
                num_scalar_prefetch=0,
                grid=(grid_b,),
                in_specs=[
                    pl.BlockSpec((tb, D), lambda i: (i, 0)),
                    pl.BlockSpec((tb, D), lambda i: (i, 0)),
                ],
                out_specs=pl.BlockSpec((tb, 1), lambda i: (i, 0)),
            ),
            compiler_params=pltpu.CompilerParams(
                dimension_semantics=("parallel",),
                vmem_limit_bytes=vmem_limit_bytes,
            ),
        )(inputs, targets)
    else:
        grid_k = pl.cdiv(D, tk)
        out2d = pl.pallas_call(
            functools.partial(
                _euclidean_kernel_ktiled, d_total=D, tk=tk, native_diff=native_diff
            ),
            out_shape=out_shape,
            grid_spec=pltpu.PrefetchScalarGridSpec(
                num_scalar_prefetch=0,
                grid=(grid_b, grid_k),  # reduction (K) axis last
                in_specs=[
                    pl.BlockSpec((tb, tk), lambda i, k: (i, k)),
                    pl.BlockSpec((tb, tk), lambda i, k: (i, k)),
                ],
                out_specs=pl.BlockSpec((tb, 1), lambda i, k: (i, 0)),
                scratch_shapes=[pltpu.VMEM((tb, 1), jnp.float32)],
            ),
            compiler_params=pltpu.CompilerParams(
                dimension_semantics=("parallel", "arbitrary"),
                vmem_limit_bytes=vmem_limit_bytes,
            ),
        )(inputs, targets)

    return out2d[:, 0]  # (B,)


# ------------------------------- demo ----------------------------------------


if __name__ == "__main__":
    key = jax.random.PRNGKey(0)
    k1, k2, k3, k4, k5, k6 = jax.random.split(key, 6)

    # 1) f32 inputs, small D -> fused single-pass path (auto batch tiling).
    B, D = 256, 128
    x = jax.random.normal(k1, (B, D), dtype=jnp.float32)
    t = jax.random.normal(k2, (B, D), dtype=jnp.float32)
    out = jax.block_until_ready(euclidean_loss(x, t))
    ref = jnp.sqrt(jnp.sum((x - t) ** 2, axis=1))
    assert out.shape == (B,)
    assert jnp.allclose(out, ref, rtol=1e-5, atol=1e-5)

    # 2) Ragged rows + non-128-multiple feature dim, fused path, no padding.
    B1, D1 = 100, 130
    x1 = jax.random.normal(k3, (B1, D1), dtype=jnp.float32)
    t1 = jax.random.normal(k4, (B1, D1), dtype=jnp.float32)
    out1 = jax.block_until_ready(euclidean_loss(x1, t1))
    ref1 = jnp.sqrt(jnp.sum((x1 - t1) ** 2, axis=1))
    assert out1.shape == (B1,)
    assert jnp.allclose(out1, ref1, rtol=1e-5, atol=1e-5)

    # 3) bf16 inputs: native-dtype DMA.  (a) exact upcast-first path,
    #    (b) native bf16-subtract fast path (slightly looser numerics).
    x_bf = x.astype(jnp.bfloat16)
    t_bf = t.astype(jnp.bfloat16)
    ref_bf = jnp.sqrt(
        jnp.sum((x_bf.astype(jnp.float32) - t_bf.astype(jnp.float32)) ** 2, axis=1)
    )
    out_bf_exact = jax.block_until_ready(euclidean_loss(x_bf, t_bf, native_diff=False))
    assert jnp.allclose(out_bf_exact, ref_bf, rtol=1e-4, atol=1e-4)
    out_bf_fast = jax.block_until_ready(euclidean_loss(x_bf, t_bf))  # auto native_diff
    assert jnp.allclose(out_bf_fast, ref_bf, rtol=2e-2, atol=2e-2)

    # 4) K-tiled accumulator path with a ragged last K tile (in-kernel mask).
    B2, D2 = 64, 300
    x2 = jax.random.normal(k5, (B2, D2), dtype=jnp.float32)
    t2 = jax.random.normal(k6, (B2, D2), dtype=jnp.float32)
    out2 = jax.block_until_ready(euclidean_loss(x2, t2, tk=128))
    ref2 = jnp.sqrt(jnp.sum((x2 - t2) ** 2, axis=1))
    assert out2.shape == (B2,)
    assert jnp.allclose(out2, ref2, rtol=1e-4, atol=1e-4)

    print("KERNEL_OK")
</pallas_src>

<mosaic_0001>
module attributes {stable_mosaic.version = 11 : i64} {
  func.func @_euclidean_kernel_fused(%arg0: i32, %arg1: memref<128x128xf32, #tpu.memory_space<vmem>>, %arg2: memref<128x128xf32, #tpu.memory_space<vmem>>, %arg3: memref<128x1xf32, #tpu.memory_space<vmem>>) attributes {dimension_semantics = [#tpu.dimension_semantics<parallel>], iteration_bounds = array<i64: 2>, scalar_prefetch = 0 : i64, scratch_operands = 0 : i64, tpu.core_type = #tpu.core_type<tc>, window_params = [{transform_indices = @transform_0, window_bounds = array<i64: 128, 128>}, {transform_indices = @transform_1, window_bounds = array<i64: 128, 128>}, {transform_indices = @transform_2, window_bounds = array<i64: 128, 1>}]} {
    %c0 = arith.constant 0 : index
    %c0_0 = arith.constant 0 : index
    %0 = vector.load %arg1[%c0, %c0_0] : memref<128x128xf32, #tpu.memory_space<vmem>>, vector<128x128xf32>
    %c0_1 = arith.constant 0 : index
    %c0_2 = arith.constant 0 : index
    %1 = vector.load %arg2[%c0_1, %c0_2] : memref<128x128xf32, #tpu.memory_space<vmem>>, vector<128x128xf32>
    %2 = arith.subf %0, %1 : vector<128x128xf32>
    %3 = arith.mulf %2, %2 : vector<128x128xf32>
    %cst = arith.constant dense<0.000000e+00> : vector<128xf32>
    %4 = vector.multi_reduction <add>, %3, %cst [1] : vector<128x128xf32> to vector<128xf32>
    %5 = vector.shape_cast %4 : vector<128xf32> to vector<128x1xf32>
    %6 = math.sqrt %5 : vector<128x1xf32>
    %c0_3 = arith.constant 0 : index
    %c0_4 = arith.constant 0 : index
    %7 = vector.load %arg3[%c0_3, %c0_4] : memref<128x1xf32, #tpu.memory_space<vmem>>, vector<128x1xf32>
    tpu.vector_store %arg3[%c0_3, %c0_4], %6 {strides = array<i32>} : memref<128x1xf32, #tpu.memory_space<vmem>>, vector<128x1xf32>,
    return
  }
  func.func @transform_0(%arg0: i32) -> (i32, i32) {
    %c0_i32 = arith.constant 0 : i32
    %c0_i32_0 = arith.constant 0 : i32
    return %arg0, %c0_i32 : i32, i32
  }
  func.func @transform_1(%arg0: i32) -> (i32, i32) {
    %c0_i32 = arith.constant 0 : i32
    %c0_i32_0 = arith.constant 0 : i32
    return %arg0, %c0_i32 : i32, i32
  }
  func.func @transform_2(%arg0: i32) -> (i32, i32) {
    %c0_i32 = arith.constant 0 : i32
    %c0_i32_0 = arith.constant 0 : i32
    return %arg0, %c0_i32 : i32, i32
  }
}

</mosaic_0001>

<llo_original>
// kernel: tpu_custom_call.1
$region0: #{tpu_custom_call.1}
  #allocation0 [shape = 'u32[]', space=smem, size = 0x4, offset = 0x4, fixed_abs, tag = 'smem constant byte address 0x4 - core index']
  #allocation1 [shape = 'u32[144,128]{1,0:T(1,128)}', space=vmem, size = 0x12000, scoped, tag = 'internal scratch']
  %s0 = inlined_call_operand.hbm [shape: f32[256,128], index: 0, kind: input, shape index: {}]
  %s1 = inlined_call_operand.hbm [shape: f32[256,128], index: 1, kind: input, shape index: {}]
  %s2 = inlined_call_operand.vmem [shape: f32[256,1], index: 2, kind: output, shape index: {}]
  %s3 = sld [smem:[#allocation0]]
  $region49: #{tpu_custom_call.1} parent=0
    _
  %s5 = ssub.s32 1, %s3
  %s6 = scalar_select 0, %s5, %s3
  $region1: #{tpu_custom_call.1} parent=0
    #allocation2 [shape = 'u8[131072]{0}', space=vmem, size = 0x20000, scoped, tag = 'input window, operand 0']
    #allocation3 [shape = 's32[2]{0}', space=sflag, size = 0x8, scoped, tag = 'scoped memory for tpu_custom_call.1']
    #allocation4 [shape = 'u8[131072]{0}', space=vmem, size = 0x20000, scoped, tag = 'input window, operand 1']
    #allocation5 [shape = 's32[2]{0}', space=sflag, size = 0x8, scoped, tag = 'scoped memory for tpu_custom_call.1']
    %7 = vsyncpa [#allocation3], 0
    %s8 = scalar_lea.sflag [#allocation3], 1
    %9 = vsyncpa %s8, 0
    %10 = vsyncpa [#allocation5], 0
    %s11 = scalar_lea.sflag [#allocation5], 1
    %12 = vsyncpa %s11, 0
    loop: start=0, step=1, limit=4
    $region2: #{tpu_custom_call.1} parent=1 // loop_pre_header
      _
    $region3: #{tpu_custom_call.1} parent=1 // loop_header
      %s14 = sphi 0, %s18
      %p15 = scmp.ge.s32.totalorder %s14, 4
      %s24 = sphi 0, %s26
      %s27 = sphi 0, %s24
      %s28 = sphi 0, %s27
      %s44 = sphi 0, %s28
      %s50 = sphi 0, %s52
      %s53 = sphi 0, %s50
      %s54 = sphi 0, %s53
      %s70 = sphi 0, %s54
      %s76 = sphi 0, %s78
      %s79 = sphi 0, %s76
      %s80 = sphi 0, %s79
      %s96 = sphi 0, %s80
    $region4: #{tpu_custom_call.1} parent=1 // loop_header_branch
      %17 = sbr.rel (%p15) target = $region8
    $region5: #{tpu_custom_call.1} parent=1 // loop_body
      %s19 = ssub.s32 %s14, 1
      %s20 = ssub.s32 %s14, 2
      %s21 = sadd.s32 %s14, 1
      %s22 = ssub.s32 %s14, %s21
      %p23 = scmp.eq.s32.totalorder %s22, 0
      %s25 = sadd.s32 %s24, 1
      %s26 = scalar_select %p23, %s24, %s25
      %p29 = pneg %p23
      %p30 = scmp.eq.s32.totalorder %s14, 1
      %p31 = por %p29, %p30
      %p32 = scmp.ne.s32.totalorder %s24, %s27
      %p33 = scmp.eq.s32.totalorder %s14, 0
      %p34 = por %p32, %p33
      %p35 = scmp.ne.s32.totalorder %s24, %s27
      %p36 = scmp.eq.s32.totalorder %s19, 1
      %p37 = por %p35, %p36
      %p38 = scmp.ne.s32.totalorder %s27, %s28
      %p39 = scmp.eq.s32.totalorder %s19, 0
      %p40 = por %p38, %p39
      %p41 = scmp.ne.s32.totalorder %s27, %s28
      %p42 = scmp.eq.s32.totalorder %s20, 1
      %p43 = por %p41, %p42
      %p45 = scmp.ne.s32.totalorder %s28, %s44
      %p46 = scmp.eq.s32.totalorder %s20, 0
      %p47 = por %p45, %p46
      %s48 = ssub.s32 %s14, %s21
      %p49 = scmp.eq.s32.totalorder %s48, 0
      %s51 = sadd.s32 %s50, 1
      %s52 = scalar_select %p49, %s50, %s51
      %p55 = pneg %p49
      %p56 = scmp.eq.s32.totalorder %s14, 1
      %p57 = por %p55, %p56
      %p58 = scmp.ne.s32.totalorder %s50, %s53
      %p59 = scmp.eq.s32.totalorder %s14, 0
      %p60 = por %p58, %p59
      %p61 = scmp.ne.s32.totalorder %s50, %s53
      %p62 = scmp.eq.s32.totalorder %s19, 1
      %p63 = por %p61, %p62
      %p64 = scmp.ne.s32.totalorder %s53, %s54
      %p65 = scmp.eq.s32.totalorder %s19, 0
      %p66 = por %p64, %p65
      %p67 = scmp.ne.s32.totalorder %s53, %s54
      %p68 = scmp.eq.s32.totalorder %s20, 1
      %p69 = por %p67, %p68
      %p71 = scmp.ne.s32.totalorder %s54, %s70
      %p72 = scmp.eq.s32.totalorder %s20, 0
      %p73 = por %p71, %p72
      %s74 = ssub.s32 %s14, %s21
      %p75 = scmp.eq.s32.totalorder %s74, 0
      %s77 = sadd.s32 %s76, 1
      %s78 = scalar_select %p75, %s76, %s77
      %p81 = pneg %p75
      %p82 = scmp.eq.s32.totalorder %s14, 1
      %p83 = por %p81, %p82
      %p84 = scmp.ne.s32.totalorder %s76, %s79
      %p85 = scmp.eq.s32.totalorder %s14, 0
      %p86 = por %p84, %p85
      %p87 = scmp.ne.s32.totalorder %s76, %s79
      %p88 = scmp.eq.s32.totalorder %s19, 1
      %p89 = por %p87, %p88
      %p90 = scmp.ne.s32.totalorder %s79, %s80
      %p91 = scmp.eq.s32.totalorder %s19, 0
      %p92 = por %p90, %p91
      %p93 = scmp.ne.s32.totalorder %s79, %s80
      %p94 = scmp.eq.s32.totalorder %s20, 1
      %p95 = por %p93, %p94
      %p97 = scmp.ne.s32.totalorder %s80, %s96
      %p98 = scmp.eq.s32.totalorder %s20, 0
      %p99 = por %p97, %p98
      %p100 = scmp.le.s32.totalorder 1, %s14
      %p101 = scmp.lt.s32.totalorder %s14, 3
      %p102 = pnand %p100, %p101
      %p103 = pneg %p102
      // Predicated region
      $region9: #{tpu_custom_call.1} parent=5 // pred_check
        _
      $region10: #{tpu_custom_call.1} parent=5 // pred_check_branch
        %105 = sbr.rel (%p102) target = $region12
      $region11: #{tpu_custom_call.1} parent=5 // pred_region
        %s106 = ssub.s32 %s14, 1
      $region12: #{tpu_custom_call.1} parent=5 // pred_fallthru
        _
      %p107 = scmp.lt.s32.totalorder %s14, 2
      // Predicated region
      $region13: #{tpu_custom_call.1} parent=5 // pred_check
        %p108 = pneg %p107
      $region14: #{tpu_custom_call.1} parent=5 // pred_check_branch
        %110 = sbr.rel (%p108) target = $region16
      $region15: #{tpu_custom_call.1} parent=5 // pred_region
        // Predicated region
        $region17: #{tpu_custom_call.1} parent=15 // pred_check
          %p111 = pneg %p34
        $region18: #{tpu_custom_call.1} parent=15 // pred_check_branch
          %113 = sbr.rel (%p111) target = $region20
        $region19: #{tpu_custom_call.1} parent=15 // pred_region
          %s114 = sand.u32 %s24, 1
          %s115 = scalar_lea.sflag [#allocation3], %s114
          %s116 = sand.u32 %s24, 1
          %s117 = smul.addr %s116, 128
          %s118 = scalar_lea.vmem [#allocation2], %s117
          %s119 = smul.u32 16, %s14
          %s121 = ssub.s32 2048, 2048
          %122 = vsyncadd %s115, %s121
          %s123 = smul.addr %s119, 128
          %s124 = scalar_lea.hbm %s0, %s123
          %s125 = sshll.u32 %s118, 4
          %s126 = int_to_ptr.vmem [resolvable:$true] %s125
          %131 = dma.hbm_to_vmem [thread:$0]  %s124, 2048, %s126, %s115, 128, 128, 8
        $region20: #{tpu_custom_call.1} parent=15 // pred_fallthru
          _
        // Predicated region
        $region21: #{tpu_custom_call.1} parent=15 // pred_check
          %p132 = pneg %p60
        $region22: #{tpu_custom_call.1} parent=15 // pred_check_branch
          %134 = sbr.rel (%p132) target = $region24
        $region23: #{tpu_custom_call.1} parent=15 // pred_region
          %s135 = sand.u32 %s50, 1
          %s136 = scalar_lea.sflag [#allocation5], %s135
          %s137 = sand.u32 %s50, 1
          %s138 = smul.addr %s137, 128
          %s139 = scalar_lea.vmem [#allocation4], %s138
          %s140 = smul.u32 16, %s14
          %s142 = ssub.s32 2048, 2048
          %143 = vsyncadd %s136, %s142
          %s144 = smul.addr %s140, 128
          %s145 = scalar_lea.hbm %s1, %s144
          %s146 = sshll.u32 %s139, 4
          %s147 = int_to_ptr.vmem [resolvable:$true] %s146
          %152 = dma.hbm_to_vmem [thread:$0]  %s145, 2048, %s147, %s136, 128, 128, 8
        $region24: #{tpu_custom_call.1} parent=15 // pred_fallthru
          _
      $region16: #{tpu_custom_call.1} parent=5 // pred_fallthru
        _
      %p153 = scmp.le.s32.totalorder 1, %s14
      %p154 = scmp.lt.s32.totalorder %s14, 3
      %p155 = pnand %p153, %p154
      %p156 = pneg %p155
      // Predicated region
      $region25: #{tpu_custom_call.1} parent=5 // pred_check
        _
      $region26: #{tpu_custom_call.1} parent=5 // pred_check_branch
        %158 = sbr.rel (%p155) target = $region28
      $region27: #{tpu_custom_call.1} parent=5 // pred_region
        %s159 = ssub.s32 %s14, 1
        %s160 = sand.u32 %s27, 1
        %s161 = scalar_lea.sflag [#allocation3], %s160
        %s162 = sand.u32 %s27, 1
        %s163 = smul.addr %s162, 128
        %s164 = scalar_lea.vmem [#allocation2], %s163
        // Predicated region
        $region29: #{tpu_custom_call.1} parent=27 // pred_check
          %p165 = pneg %p40
        $region30: #{tpu_custom_call.1} parent=27 // pred_check_branch
          %167 = sbr.rel (%p165) target = $region32
        $region31: #{tpu_custom_call.1} parent=27 // pred_region
          %168 = dma.done %s161, 2048
        $region32: #{tpu_custom_call.1} parent=27 // pred_fallthru
          _
        %s169 = sand.u32 %s53, 1
        %s170 = scalar_lea.sflag [#allocation5], %s169
        %s171 = sand.u32 %s53, 1
        %s172 = smul.addr %s171, 128
        %s173 = scalar_lea.vmem [#allocation4], %s172
        // Predicated region
        $region33: #{tpu_custom_call.1} parent=27 // pred_check
          %p174 = pneg %p66
        $region34: #{tpu_custom_call.1} parent=27 // pred_check_branch
          %176 = sbr.rel (%p174) target = $region36
        $region35: #{tpu_custom_call.1} parent=27 // pred_region
          %177 = dma.done %s170, 2048
        $region36: #{tpu_custom_call.1} parent=27 // pred_fallthru
          _
        %s178 = sand.u32 %s27, 1
        %s179 = scalar_lea.sflag [#allocation3], %s178
        %s180 = sand.u32 %s27, 1
        %s181 = smul.addr %s180, 128
        %s182 = scalar_lea.vmem [#allocation2], %s181
        %p183 = pneg %p40
        %p184 = pneg %p37
        %s185 = sand.u32 %s53, 1
        %s186 = scalar_lea.sflag [#allocation5], %s185
        %s187 = sand.u32 %s53, 1
        %s188 = smul.addr %s187, 128
        %s189 = scalar_lea.vmem [#allocation4], %s188
        %p190 = pneg %p66
        %p191 = pneg %p63
        %p192 = pneg %p92
        %p193 = pneg %p89
        %s194 = smul.u32 16, %s19
        %p195 = scmp.lt.s32.totalorder %s194, 31
        %s196 = scalar_select %p195, %s194, 31
        %s197 = smul.addr %s196, 8
        %s198 = scalar_lea.vmem %s2, %s197
        %s199 = smul.u32 16, %s19
        %s200 = smul.u32 16, %s19
        %s201 = smul.u32 16, %s19
        %p202 = scmp.lt.s32.totalorder %s201, 31
        %s203 = scalar_select %p202, %s201, 31
        %s204 = smul.addr %s203, 8
        %s205 = scalar_lea.vmem %s2, %s204
        %s206 = smul.u32 16, %s19
        %v207 = vld [vmem:[%s164] sm:$0xff]
        %v208 = vld [vmem:[%s164 + $0x8] sm:$0xff]
        %v209 = vld [vmem:[%s164 + $0x10] sm:$0xff]
        %v210 = vld [vmem:[%s164 + $0x18] sm:$0xff]
        %v211 = vld [vmem:[%s164 + $0x20] sm:$0xff]
        %v212 = vld [vmem:[%s164 + $0x28] sm:$0xff]
        %v213 = vld [vmem:[%s164 + $0x30] sm:$0xff]
        %v214 = vld [vmem:[%s164 + $0x38] sm:$0xff]
        %v215 = vld [vmem:[%s164 + $0x40] sm:$0xff]
        %v216 = vld [vmem:[%s164 + $0x48] sm:$0xff]
        %v217 = vld [vmem:[%s164 + $0x50] sm:$0xff]
        %v218 = vld [vmem:[%s164 + $0x58] sm:$0xff]
        %v219 = vld [vmem:[%s164 + $0x60] sm:$0xff]
        %v220 = vld [vmem:[%s164 + $0x68] sm:$0xff]
        %v221 = vld [vmem:[%s164 + $0x70] sm:$0xff]
        %v222 = vld [vmem:[%s164 + $0x78] sm:$0xff]
        %v223 = vld [vmem:[%s173] sm:$0xff]
        %v224 = vld [vmem:[%s173 + $0x8] sm:$0xff]
        %v225 = vld [vmem:[%s173 + $0x10] sm:$0xff]
        %v226 = vld [vmem:[%s173 + $0x18] sm:$0xff]
        %v227 = vld [vmem:[%s173 + $0x20] sm:$0xff]
        %v228 = vld [vmem:[%s173 + $0x28] sm:$0xff]
        %v229 = vld [vmem:[%s173 + $0x30] sm:$0xff]
        %v230 = vld [vmem:[%s173 + $0x38] sm:$0xff]
        %v231 = vld [vmem:[%s173 + $0x40] sm:$0xff]
        %v232 = vld [vmem:[%s173 + $0x48] sm:$0xff]
        %v233 = vld [vmem:[%s173 + $0x50] sm:$0xff]
        %v234 = vld [vmem:[%s173 + $0x58] sm:$0xff]
        %v235 = vld [vmem:[%s173 + $0x60] sm:$0xff]
        %v236 = vld [vmem:[%s173 + $0x68] sm:$0xff]
        %v237 = vld [vmem:[%s173 + $0x70] sm:$0xff]
        %v238 = vld [vmem:[%s173 + $0x78] sm:$0xff]
        %v239 = vsub.f32 %v207, %v223
        %v240 = vsub.f32 %v208, %v224
        %v241 = vsub.f32 %v209, %v225
        %v242 = vsub.f32 %v210, %v226
        %v243 = vsub.f32 %v211, %v227
        %v244 = vsub.f32 %v212, %v228
        %v245 = vsub.f32 %v213, %v229
        %v246 = vsub.f32 %v214, %v230
        %v247 = vsub.f32 %v215, %v231
        %v248 = vsub.f32 %v216, %v232
        %v249 = vsub.f32 %v217, %v233
        %v250 = vsub.f32 %v218, %v234
        %v251 = vsub.f32 %v219, %v235
        %v252 = vsub.f32 %v220, %v236
        %v253 = vsub.f32 %v221, %v237
        %v254 = vsub.f32 %v222, %v238
        %v255 = vmul.f32 %v239, %v239
        %v256 = vmul.f32 %v240, %v240
        %v257 = vmul.f32 %v241, %v241
        %v258 = vmul.f32 %v242, %v242
        %v259 = vmul.f32 %v243, %v243
        %v260 = vmul.f32 %v244, %v244
        %v261 = vmul.f32 %v245, %v245
        %v262 = vmul.f32 %v246, %v246
        %v263 = vmul.f32 %v247, %v247
        %v264 = vmul.f32 %v248, %v248
        %v265 = vmul.f32 %v249, %v249
        %v266 = vmul.f32 %v250, %v250
        %v267 = vmul.f32 %v251, %v251
        %v268 = vmul.f32 %v252, %v252
        %v269 = vmul.f32 %v253, %v253
        %v270 = vmul.f32 %v254, %v254
        %271 = vadd.xlane.f32.xlu0 %v255
        %v272 = vpop.xlane.xlu0 %271
        %273 = vadd.xlane.f32.xlu0 %v256
        %v274 = vpop.xlane.xlu0 %273
        %275 = vadd.xlane.f32.xlu0 %v257
        %v276 = vpop.xlane.xlu0 %275
        %277 = vadd.xlane.f32.xlu0 %v258
        %v278 = vpop.xlane.xlu0 %277
        %279 = vadd.xlane.f32.xlu0 %v259
        %v280 = vpop.xlane.xlu0 %279
        %281 = vadd.xlane.f32.xlu0 %v260
        %v282 = vpop.xlane.xlu0 %281
        %283 = vadd.xlane.f32.xlu0 %v261
        %v284 = vpop.xlane.xlu0 %283
        %285 = vadd.xlane.f32.xlu0 %v262
        %v286 = vpop.xlane.xlu0 %285
        %287 = vadd.xlane.f32.xlu0 %v263
        %v288 = vpop.xlane.xlu0 %287
        %289 = vadd.xlane.f32.xlu0 %v264
        %v290 = vpop.xlane.xlu0 %289
        %291 = vadd.xlane.f32.xlu0 %v265
        %v292 = vpop.xlane.xlu0 %291
        %293 = vadd.xlane.f32.xlu0 %v266
        %v294 = vpop.xlane.xlu0 %293
        %295 = vadd.xlane.f32.xlu0 %v267
        %v296 = vpop.xlane.xlu0 %295
        %297 = vadd.xlane.f32.xlu0 %v268
        %v298 = vpop.xlane.xlu0 %297
        %299 = vadd.xlane.f32.xlu0 %v269
        %v300 = vpop.xlane.xlu0 %299
        %301 = vadd.xlane.f32.xlu0 %v270
        %v302 = vpop.xlane.xlu0 %301
        %v303 = vrsqrt.pop %v272
        %v304 = vmul.f32 %v272, %v303
        %vm305 = vcmp.eq.f32.partialorder %v272, inf
        %v306 = vsel %vm305, %v272, %v304
        %vm307 = vcmp.eq.f32.partialorder %v272, 0.0
        %v308 = vand.u32 %v272, 2147483648
        %v309 = vsel %vm307, %v308, %v306
        %v310 = vrsqrt.pop %v274
        %v311 = vmul.f32 %v274, %v310
        %vm312 = vcmp.eq.f32.partialorder %v274, inf
        %v313 = vsel %vm312, %v274, %v311
        %vm314 = vcmp.eq.f32.partialorder %v274, 0.0
        %v315 = vand.u32 %v274, 2147483648
        %v316 = vsel %vm314, %v315, %v313
        %v317 = vrsqrt.pop %v276
        %v318 = vmul.f32 %v276, %v317
        %vm319 = vcmp.eq.f32.partialorder %v276, inf
        %v320 = vsel %vm319, %v276, %v318
        %vm321 = vcmp.eq.f32.partialorder %v276, 0.0
        %v322 = vand.u32 %v276, 2147483648
        %v323 = vsel %vm321, %v322, %v320
        %v324 = vrsqrt.pop %v278
        %v325 = vmul.f32 %v278, %v324
        %vm326 = vcmp.eq.f32.partialorder %v278, inf
        %v327 = vsel %vm326, %v278, %v325
        %vm328 = vcmp.eq.f32.partialorder %v278, 0.0
        %v329 = vand.u32 %v278, 2147483648
        %v330 = vsel %vm328, %v329, %v327
        %v331 = vrsqrt.pop %v280
        %v332 = vmul.f32 %v280, %v331
        %vm333 = vcmp.eq.f32.partialorder %v280, inf
        %v334 = vsel %vm333, %v280, %v332
        %vm335 = vcmp.eq.f32.partialorder %v280, 0.0
        %v336 = vand.u32 %v280, 2147483648
        %v337 = vsel %vm335, %v336, %v334
        %v338 = vrsqrt.pop %v282
        %v339 = vmul.f32 %v282, %v338
        %vm340 = vcmp.eq.f32.partialorder %v282, inf
        %v341 = vsel %vm340, %v282, %v339
        %vm342 = vcmp.eq.f32.partialorder %v282, 0.0
        %v343 = vand.u32 %v282, 2147483648
        %v344 = vsel %vm342, %v343, %v341
        %v345 = vrsqrt.pop %v284
        %v346 = vmul.f32 %v284, %v345
        %vm347 = vcmp.eq.f32.partialorder %v284, inf
        %v348 = vsel %vm347, %v284, %v346
        %vm349 = vcmp.eq.f32.partialorder %v284, 0.0
        %v350 = vand.u32 %v284, 2147483648
        %v351 = vsel %vm349, %v350, %v348
        %v352 = vrsqrt.pop %v286
        %v353 = vmul.f32 %v286, %v352
        %vm354 = vcmp.eq.f32.partialorder %v286, inf
        %v355 = vsel %vm354, %v286, %v353
        %vm356 = vcmp.eq.f32.partialorder %v286, 0.0
        %v357 = vand.u32 %v286, 2147483648
        %v358 = vsel %vm356, %v357, %v355
        %v359 = vrsqrt.pop %v288
        %v360 = vmul.f32 %v288, %v359
        %vm361 = vcmp.eq.f32.partialorder %v288, inf
        %v362 = vsel %vm361, %v288, %v360
        %vm363 = vcmp.eq.f32.partialorder %v288, 0.0
        %v364 = vand.u32 %v288, 2147483648
        %v365 = vsel %vm363, %v364, %v362
        %v366 = vrsqrt.pop %v290
        %v367 = vmul.f32 %v290, %v366
        %vm368 = vcmp.eq.f32.partialorder %v290, inf
        %v369 = vsel %vm368, %v290, %v367
        %vm370 = vcmp.eq.f32.partialorder %v290, 0.0
        %v371 = vand.u32 %v290, 2147483648
        %v372 = vsel %vm370, %v371, %v369
        %v373 = vrsqrt.pop %v292
        %v374 = vmul.f32 %v292, %v373
        %vm375 = vcmp.eq.f32.partialorder %v292, inf
        %v376 = vsel %vm375, %v292, %v374
        %vm377 = vcmp.eq.f32.partialorder %v292, 0.0
        %v378 = vand.u32 %v292, 2147483648
        %v379 = vsel %vm377, %v378, %v376
        %v380 = vrsqrt.pop %v294
        %v381 = vmul.f32 %v294, %v380
        %vm382 = vcmp.eq.f32.partialorder %v294, inf
        %v383 = vsel %vm382, %v294, %v381
        %vm384 = vcmp.eq.f32.partialorder %v294, 0.0
        %v385 = vand.u32 %v294, 2147483648
        %v386 = vsel %vm384, %v385, %v383
        %v387 = vrsqrt.pop %v296
        %v388 = vmul.f32 %v296, %v387
        %vm389 = vcmp.eq.f32.partialorder %v296, inf
        %v390 = vsel %vm389, %v296, %v388
        %vm391 = vcmp.eq.f32.partialorder %v296, 0.0
        %v392 = vand.u32 %v296, 2147483648
        %v393 = vsel %vm391, %v392, %v390
        %v394 = vrsqrt.pop %v298
        %v395 = vmul.f32 %v298, %v394
        %vm396 = vcmp.eq.f32.partialorder %v298, inf
        %v397 = vsel %vm396, %v298, %v395
        %vm398 = vcmp.eq.f32.partialorder %v298, 0.0
        %v399 = vand.u32 %v298, 2147483648
        %v400 = vsel %vm398, %v399, %v397
        %v401 = vrsqrt.pop %v300
        %v402 = vmul.f32 %v300, %v401
        %vm403 = vcmp.eq.f32.partialorder %v300, inf
        %v404 = vsel %vm403, %v300, %v402
        %vm405 = vcmp.eq.f32.partialorder %v300, 0.0
        %v406 = vand.u32 %v300, 2147483648
        %v407 = vsel %vm405, %v406, %v404
        %v408 = vrsqrt.pop %v302
        %v409 = vmul.f32 %v302, %v408
        %vm410 = vcmp.eq.f32.partialorder %v302, inf
        %v411 = vsel %vm410, %v302, %v409
        %vm412 = vcmp.eq.f32.partialorder %v302, 0.0
        %v413 = vand.u32 %v302, 2147483648
        %v414 = vsel %vm412, %v413, %v411
        %vm415 = vcmask 7168
        %416 = vst.msk [vmem:[%s205] sm:$0xff] %vm415, %v309
        %417 = vst.msk [vmem:[%s205 + $0x8] sm:$0xff] %vm415, %v316
        %418 = vst.msk [vmem:[%s205 + $0x10] sm:$0xff] %vm415, %v323
        %419 = vst.msk [vmem:[%s205 + $0x18] sm:$0xff] %vm415, %v330
        %420 = vst.msk [vmem:[%s205 + $0x20] sm:$0xff] %vm415, %v337
        %421 = vst.msk [vmem:[%s205 + $0x28] sm:$0xff] %vm415, %v344
        %422 = vst.msk [vmem:[%s205 + $0x30] sm:$0xff] %vm415, %v351
        %423 = vst.msk [vmem:[%s205 + $0x38] sm:$0xff] %vm415, %v358
        %424 = vst.msk [vmem:[%s205 + $0x40] sm:$0xff] %vm415, %v365
        %425 = vst.msk [vmem:[%s205 + $0x48] sm:$0xff] %vm415, %v372
        %426 = vst.msk [vmem:[%s205 + $0x50] sm:$0xff] %vm415, %v379
        %427 = vst.msk [vmem:[%s205 + $0x58] sm:$0xff] %vm415, %v386
        %428 = vst.msk [vmem:[%s205 + $0x60] sm:$0xff] %vm415, %v393
        %429 = vst.msk [vmem:[%s205 + $0x68] sm:$0xff] %vm415, %v400
        %430 = vst.msk [vmem:[%s205 + $0x70] sm:$0xff] %vm415, %v407
        %431 = vst.msk [vmem:[%s205 + $0x78] sm:$0xff] %vm415, %v414
        %s432 = smul.u32 16, %s19
        %p433 = scmp.lt.s32.totalorder %s432, 31
        %s434 = scalar_select %p433, %s432, 31
        %s435 = smul.addr %s434, 8
        %s436 = scalar_lea.vmem %s2, %s435
        // Predicated region
        $region37: #{tpu_custom_call.1} parent=27 // pred_check
          %p437 = pneg %p89
        $region38: #{tpu_custom_call.1} parent=27 // pred_check_branch
          %439 = sbr.rel (%p437) target = $region40
        $region39: #{tpu_custom_call.1} parent=27 // pred_region
          %s440 = smul.u32 16, %s19
        $region40: #{tpu_custom_call.1} parent=27 // pred_fallthru
          _
      $region28: #{tpu_custom_call.1} parent=5 // pred_fallthru
        _
      %p441 = scmp.le.s32.totalorder 2, %s14
      // Predicated region
      $region41: #{tpu_custom_call.1} parent=5 // pred_check
        %p442 = pneg %p441
      $region42: #{tpu_custom_call.1} parent=5 // pred_check_branch
        %444 = sbr.rel (%p442) target = $region44
      $region43: #{tpu_custom_call.1} parent=5 // pred_region
        %s445 = ssub.s32 %s14, 2
        // Predicated region
        $region45: #{tpu_custom_call.1} parent=43 // pred_check
          %p446 = pneg %p95
        $region46: #{tpu_custom_call.1} parent=43 // pred_check_branch
          %448 = sbr.rel (%p446) target = $region48
        $region47: #{tpu_custom_call.1} parent=43 // pred_region
          %s449 = smul.u32 16, %s20
          %p450 = scmp.lt.s32.totalorder %s449, 31
          %s451 = scalar_select %p450, %s449, 31
          %s452 = smul.addr %s451, 8
          %s453 = scalar_lea.vmem %s2, %s452
        $region48: #{tpu_custom_call.1} parent=43 // pred_fallthru
          _
      $region44: #{tpu_custom_call.1} parent=5 // pred_fallthru
        _
    $region6: #{tpu_custom_call.1} parent=1 // loop_footer
      %s18 = sadd.s32 1, %s14
    $region7: #{tpu_custom_call.1} parent=1 // loop_footer_branch
      %13 = sbr.rel target = $region3
    $region8: #{tpu_custom_call.1} parent=1 // loop_exit
      _
    %454 = vsyncpa [#allocation3], 1
    %s455 = scalar_lea.sflag [#allocation3], 1
    %456 = vsyncpa %s455, 1
    %457 = vsyncpa [#allocation5], 1
    %s458 = scalar_lea.sflag [#allocation5], 1
    %459 = vsyncpa %s458, 1

</llo_original>
